<compile_context>
chip_gen: v6e
topology: v6e:2x2x1
jax: 0.10.0
libtpu: 0.0.40
codegen_flags: <defaults>
</compile_context>

<pallas_src>
import functools
import math

import jax
import jax.numpy as jnp
from jax.experimental import pallas as pl
from jax.experimental.pallas import tpu as pltpu

_LANES = 128
_EPS = 1e-5  # FocalTverskyLoss.EPS


def _device_kind() -> str:
    try:
        return jax.devices()[0].device_kind.lower()
    except Exception:
        return ""


def _tversky_sums_kernel(x_ref, t_ref, out_ref, code_ref, *, num_classes,
                         num_batches, hw, hw_tile, nj, needs_mask,
                         compute_dtype):
    """Accumulates per-lane partial sums needed by the Tversky index.

    x_ref   : (N*C, hw_tile) logits block, batch*class packed along sublanes
    t_ref   : (N, hw_tile) integer class-index block
    out_ref : (1, 3, hw_tile) f32 accumulator, resident across the reduction
              axis.  row 0 = sum(tanh(x/2)), row 1 = sum(onehot),
              row 2 = sum(onehot * tanh(x/2))
    code_ref: (N*C, hw_tile) int32 scratch holding the class-broadcast targets
    """
    j = pl.program_id(1)

    @pl.when(j == 0)
    def _():
        out_ref[...] = jnp.zeros_like(out_ref)

    c = num_classes
    nc = num_batches * c

    if needs_mask:
        i = pl.program_id(0)
        b = i * nj + j  # logical hw-block index (>= nb for the clamped dup)
        lane = b * hw_tile + jax.lax.broadcasted_iota(
            jnp.int32, (1, hw_tile), 1)
        valid = lane < hw                        # (1, hw_tile) bool

    # ---- target-side work (C-times smaller than the logit stream) --------
    t = t_ref[...].astype(jnp.int32)             # in-kernel cast (VPU, hidden)
    if needs_mask:
        t = jnp.where(valid, t, -1)              # -1 matches no class
    t_in = jnp.logical_and(t >= 0, t < c)
    sum_t = jnp.sum(t_in.astype(jnp.float32), axis=0, keepdims=True)

    # Broadcast each batch's target row across its C class rows, encoded as
    # code = bn*C + t (or -1 when out of range / masked), via a small int32
    # VMEM scratch: the hot-path one-hot test then runs at full sublane
    # occupancy as a single compare against a plain row iota.
    for bn in range(num_batches):
        row = t_ref[pl.ds(bn, 1), :].astype(jnp.int32)   # (1, hw_tile)
        in_r = jnp.logical_and(row >= 0, row < c)
        if needs_mask:
            in_r = jnp.logical_and(in_r, valid)
        code = jnp.where(in_r, row + bn * c, -1)
        code_ref[pl.ds(bn * c, c), :] = jnp.broadcast_to(code, (c, hw_tile))

    # ---- logit stream (hot path, packed (N*C, hw_tile)) -------------------
    x = x_ref[...].astype(compute_dtype)
    # sigmoid(x) = 0.5 * tanh(0.5 * x) + 0.5 ; the affine part is
    # reconstructed once in the wrapper, so only tanh sums are accumulated.
    th = jnp.tanh(0.5 * x)                                   # (N*C, hw_tile)

    rowid = jax.lax.broadcasted_iota(jnp.int32, (nc, 1), 0)  # row = bn*C + cls
    th_sel = jnp.where(code_ref[...] == rowid, th, 0.0)      # implicit one-hot

    sum_th = jnp.sum(th, axis=0, keepdims=True, dtype=jnp.float32)
    sum_tht = jnp.sum(th_sel, axis=0, keepdims=True, dtype=jnp.float32)

    if needs_mask:
        # Mask on the reduced lane vector only (select, not multiply, so any
        # stale-VMEM NaNs in the padded tail cannot leak into the sum).
        sum_th = jnp.where(valid, sum_th, 0.0)

    out_ref[0, 0:1, :] += sum_th
    out_ref[0, 1:2, :] += sum_t
    out_ref[0, 2:3, :] += sum_tht


@jax.jit
def focal_tversky_loss(inputs, targets, smooth=1.0, alpha=0.5, beta=0.5,
                       gamma=0.5):
    """JAX/Pallas equivalent of FocalTverskyLoss.forward(inputs, targets)."""
    n, c = inputs.shape[0], inputs.shape[1]
    hw = math.prod(inputs.shape[2:])
    nc = n * c

    # Contiguous reshapes only (no copy, no transpose).
    x = inputs.reshape(nc, hw)                 # batch*class packed on sublanes
    t = targets.reshape(n, hw)
    if (not jnp.issubdtype(t.dtype, jnp.integer)) or t.dtype.itemsize > 4:
        t = t.astype(jnp.int32)                # exotic dtypes: cast host-side

    kind = _device_kind()
    is_v7x = "v7" in kind
    is_megacore = is_v7x or ("v4" in kind) or ("v5p" in kind)
    is_v5e = ("v5e" in kind) or ("v5 lite" in kind) or ("v5lite" in kind)

    # bf16 math stays in bf16 on chips with a bf16 VPU/EUP; sums are f32.
    if inputs.dtype == jnp.bfloat16 and not is_v5e:
        compute_dtype = jnp.bfloat16
    else:
        compute_dtype = jnp.float32

    # HW tile: multiple of 128 lanes sized for ~8 MiB logit blocks on
    # 128-MiB-VMEM chips (v5e/v6e) and ~4 MiB on v7x, or the full HW.
    target_block_bytes = (4 << 20) if is_v7x else (8 << 20)
    bytes_per_col = nc * x.dtype.itemsize
    tile = max(_LANES,
               (target_block_bytes // max(bytes_per_col, 1)) // _LANES * _LANES)
    hw_tile = hw if tile >= hw else tile

    nb = pl.cdiv(hw, hw_tile)                  # number of hw blocks
    # Only split the grid when there are >= 2 TensorCores to shard onto;
    # on single-core chips the split is just a serial loop plus masking.
    n_par = 2 if (nb >= 2 and is_megacore) else 1
    nj = pl.cdiv(nb, n_par)                    # reduction steps per chunk
    needs_mask = (hw % hw_tile != 0) or (n_par * nj != nb)

    # VMEM budget: double-buffered streams + int32 code scratch + elementwise
    # f32 temporaries.  TODO(synk): split the N*C axis over an extra reduction
    # grid dim if nc * 128 * itemsize alone blows past this budget.
    xb = nc * hw_tile * x.dtype.itemsize
    tb = n * hw_tile * t.dtype.itemsize
    xb_f32 = nc * hw_tile * 4
    vmem_cap = (44 << 20) if is_v7x else (96 << 20)
    vmem_limit = int(min(vmem_cap,
                         max(32 << 20,
                             2 * xb + 2 * tb + 5 * xb_f32 + (4 << 20))))

    def x_index_map(i, j):
        return (0, jnp.minimum(i * nj + j, nb - 1))

    def t_index_map(i, j):
        return (0, jnp.minimum(i * nj + j, nb - 1))

    kernel = functools.partial(
        _tversky_sums_kernel, num_classes=c, num_batches=n, hw=hw,
        hw_tile=hw_tile, nj=nj, needs_mask=needs_mask,
        compute_dtype=compute_dtype)

    partials = pl.pallas_call(
        kernel,
        out_shape=jax.ShapeDtypeStruct((n_par, 3, hw_tile), jnp.float32),
        grid_spec=pltpu.PrefetchScalarGridSpec(
            num_scalar_prefetch=0,
            grid=(n_par, nj),
            in_specs=[
                pl.BlockSpec((nc, hw_tile), x_index_map),
                pl.BlockSpec((n, hw_tile), t_index_map),
            ],
            out_specs=pl.BlockSpec((1, 3, hw_tile), lambda i, j: (i, 0, 0)),
            scratch_shapes=[pltpu.VMEM((nc, hw_tile), jnp.int32)],
        ),
        compiler_params=pltpu.CompilerParams(
            # NOTE: on v7x verify with xprof that this shards over both
            # TensorCores; if not, switch to pltpu.CORE_PARALLEL.
            dimension_semantics=("parallel", "arbitrary"),
            vmem_limit_bytes=vmem_limit,
        ),
    )(x, t)

    sums = jnp.sum(partials, axis=(0, 2))      # (3,): S_th, S_t, S_tht
    s_th, s_t, s_tht = sums[0], sums[1], sums[2]
    total = float(n * c * hw)
    # sigmoid(x) = 0.5 * tanh(x/2) + 0.5  (affine reconstructed here, once)
    sum_p = 0.5 * s_th + 0.5 * total           # sum(sigmoid(x))
    tp = 0.5 * s_tht + 0.5 * s_t               # sum(onehot * sigmoid(x))
    fp = sum_p - tp                            # sum((1 - onehot) * sigmoid(x))
    fn = s_t - tp                              # sum(onehot * (1 - sigmoid(x)))
    tversky = (tp + smooth) / (tp + alpha * fp + beta * fn + smooth + _EPS)
    return (1.0 - tversky + _EPS) ** gamma


def _reference(inputs, targets, smooth=1.0, alpha=0.5, beta=0.5, gamma=0.5):
    """Pure-JAX mirror of the PyTorch forward."""
    c = inputs.shape[1]
    onehot = (targets[:, None, :, :]
              == jnp.arange(c, dtype=jnp.int32)[None, :, None, None])
    onehot = onehot.astype(jnp.float32)
    p = jax.nn.sigmoid(inputs.astype(jnp.float32)).reshape(-1)
    tt = onehot.reshape(-1)
    tp = jnp.sum(p * tt)
    fp = jnp.sum((1.0 - tt) * p)
    fn = jnp.sum(tt * (1.0 - p))
    tversky = (tp + smooth) / (tp + alpha * fp + beta * fn + smooth + _EPS)
    return (1.0 - tversky + _EPS) ** gamma


if __name__ == "__main__":
    key = jax.random.PRNGKey(0)
    k1, k2 = jax.random.split(key)

    N, C, H, W = 2, 4, 16, 16
    inputs = jax.random.normal(k1, (N, C, H, W), dtype=jnp.float32)
    targets = jax.random.randint(k2, (N, H, W), 0, C, dtype=jnp.int32)

    loss = jax.block_until_ready(focal_tversky_loss(inputs, targets))

    ref = _reference(inputs, targets)
    assert jnp.allclose(loss, ref, atol=1e-5, rtol=1e-5), (loss, ref)

    print("KERNEL_OK")
</pallas_src>

<mosaic_0001>
module attributes {stable_mosaic.version = 11 : i64} {
  func.func @_tversky_sums_kernel(%arg0: i32, %arg1: i32, %arg2: memref<8x256xf32, #tpu.memory_space<vmem>>, %arg3: memref<2x256xi32, #tpu.memory_space<vmem>>, %arg4: memref<1x3x256xf32, #tpu.memory_space<vmem>>, %arg5: memref<8x256xi32, #tpu.memory_space<vmem>>) attributes {dimension_semantics = [#tpu.dimension_semantics<parallel>, #tpu.dimension_semantics<arbitrary>], iteration_bounds = array<i64: 1, 1>, scalar_prefetch = 0 : i64, scratch_operands = 1 : i64, tpu.core_type = #tpu.core_type<tc>, window_params = [{transform_indices = @transform_0, window_bounds = array<i64: 8, 256>}, {transform_indices = @transform_1, window_bounds = array<i64: 2, 256>}, {transform_indices = @transform_2, window_bounds = array<i64: 1, 3, 256>}]} {
    %c0_i32 = arith.constant 0 : i32
    %0 = arith.cmpi eq, %arg1, %c0_i32 : i32
    %1 = arith.extui %0 : i1 to i32
    %c0_i32_0 = arith.constant 0 : i32
    %2 = arith.cmpi ne, %1, %c0_i32_0 : i32
    scf.if %2 {
      %cst_41 = arith.constant 0.000000e+00 : f32
      %71 = vector.broadcast %cst_41 : f32 to vector<1x3x256xf32>
      %c0_42 = arith.constant 0 : index
      %c0_43 = arith.constant 0 : index
      %c0_44 = arith.constant 0 : index
      %72 = vector.load %arg4[%c0_42, %c0_43, %c0_44] : memref<1x3x256xf32, #tpu.memory_space<vmem>>, vector<1x3x256xf32>
      tpu.vector_store %arg4[%c0_42, %c0_43, %c0_44], %71 {strides = array<i32>} : memref<1x3x256xf32, #tpu.memory_space<vmem>>, vector<1x3x256xf32>,
    } else {
    }
    %c0 = arith.constant 0 : index
    %c0_1 = arith.constant 0 : index
    %3 = vector.load %arg3[%c0, %c0_1] : memref<2x256xi32, #tpu.memory_space<vmem>>, vector<2x256xi32>
    %c0_i32_2 = arith.constant 0 : i32
    %4 = vector.broadcast %c0_i32_2 : i32 to vector<2x256xi32>
    %5 = arith.cmpi sge, %3, %4 : vector<2x256xi32>
    %c4_i32 = arith.constant 4 : i32
    %6 = vector.broadcast %c4_i32 : i32 to vector<2x256xi32>
    %7 = arith.cmpi slt, %3, %6 : vector<2x256xi32>
    %8 = arith.andi %5, %7 : vector<2x256xi1>
    %9 = arith.extui %8 : vector<2x256xi1> to vector<2x256xi32>
    %10 = arith.sitofp %9 : vector<2x256xi32> to vector<2x256xf32>
    %cst = arith.constant dense<0.000000e+00> : vector<256xf32>
    %11 = vector.multi_reduction <add>, %10, %cst [0] : vector<2x256xf32> to vector<256xf32>
    %12 = vector.shape_cast %11 : vector<256xf32> to vector<1x256xf32>
    %c0_3 = arith.constant 0 : index
    %c0_4 = arith.constant 0 : index
    %13 = vector.load %arg3[%c0_3, %c0_4] : memref<2x256xi32, #tpu.memory_space<vmem>>, vector<1x256xi32>
    %c0_i32_5 = arith.constant 0 : i32
    %14 = vector.broadcast %c0_i32_5 : i32 to vector<1x256xi32>
    %15 = arith.cmpi sge, %13, %14 : vector<1x256xi32>
    %c4_i32_6 = arith.constant 4 : i32
    %16 = vector.broadcast %c4_i32_6 : i32 to vector<1x256xi32>
    %17 = arith.cmpi slt, %13, %16 : vector<1x256xi32>
    %18 = arith.andi %15, %17 : vector<1x256xi1>
    %c0_i32_7 = arith.constant 0 : i32
    %19 = vector.broadcast %c0_i32_7 : i32 to vector<1x256xi32>
    %20 = arith.addi %13, %19 : vector<1x256xi32>
    %c-1_i32 = arith.constant -1 : i32
    %21 = vector.broadcast %c-1_i32 : i32 to vector<1x256xi32>
    %22 = arith.select %18, %20, %21 : vector<1x256xi1>, vector<1x256xi32>
    %23 = vector.shape_cast %22 : vector<1x256xi32> to vector<1x256xi32>
    %24 = vector.broadcast %23 : vector<1x256xi32> to vector<4x256xi32>
    %c0_8 = arith.constant 0 : index
    %c0_9 = arith.constant 0 : index
    %25 = vector.load %arg5[%c0_8, %c0_9] : memref<8x256xi32, #tpu.memory_space<vmem>>, vector<4x256xi32>
    tpu.vector_store %arg5[%c0_8, %c0_9], %24 {strides = array<i32>} : memref<8x256xi32, #tpu.memory_space<vmem>>, vector<4x256xi32>,
    %c1 = arith.constant 1 : index
    %c0_10 = arith.constant 0 : index
    %26 = vector.load %arg3[%c1, %c0_10] : memref<2x256xi32, #tpu.memory_space<vmem>>, vector<1x256xi32>
    %c0_i32_11 = arith.constant 0 : i32
    %27 = vector.broadcast %c0_i32_11 : i32 to vector<1x256xi32>
    %28 = arith.cmpi sge, %26, %27 : vector<1x256xi32>
    %c4_i32_12 = arith.constant 4 : i32
    %29 = vector.broadcast %c4_i32_12 : i32 to vector<1x256xi32>
    %30 = arith.cmpi slt, %26, %29 : vector<1x256xi32>
    %31 = arith.andi %28, %30 : vector<1x256xi1>
    %c4_i32_13 = arith.constant 4 : i32
    %32 = vector.broadcast %c4_i32_13 : i32 to vector<1x256xi32>
    %33 = arith.addi %26, %32 : vector<1x256xi32>
    %c-1_i32_14 = arith.constant -1 : i32
    %34 = vector.broadcast %c-1_i32_14 : i32 to vector<1x256xi32>
    %35 = arith.select %31, %33, %34 : vector<1x256xi1>, vector<1x256xi32>
    %36 = vector.shape_cast %35 : vector<1x256xi32> to vector<1x256xi32>
    %37 = vector.broadcast %36 : vector<1x256xi32> to vector<4x256xi32>
    %c4 = arith.constant 4 : index
    %c0_15 = arith.constant 0 : index
    %38 = vector.load %arg5[%c4, %c0_15] : memref<8x256xi32, #tpu.memory_space<vmem>>, vector<4x256xi32>
    tpu.vector_store %arg5[%c4, %c0_15], %37 {strides = array<i32>} : memref<8x256xi32, #tpu.memory_space<vmem>>, vector<4x256xi32>,
    %c0_16 = arith.constant 0 : index
    %c0_17 = arith.constant 0 : index
    %39 = vector.load %arg2[%c0_16, %c0_17] : memref<8x256xf32, #tpu.memory_space<vmem>>, vector<8x256xf32>
    %cst_18 = arith.constant 5.000000e-01 : f32
    %40 = vector.broadcast %cst_18 : f32 to vector<8x256xf32>
    %41 = arith.mulf %40, %39 : vector<8x256xf32>
    %42 = math.tanh %41 : vector<8x256xf32>
    %43 = tpu.iota {dimensions = array<i32: 0>} : vector<8x1xi32>
    %c0_19 = arith.constant 0 : index
    %c0_20 = arith.constant 0 : index
    %44 = vector.load %arg5[%c0_19, %c0_20] : memref<8x256xi32, #tpu.memory_space<vmem>>, vector<8x256xi32>
    %45 = vector.broadcast %43 : vector<8x1xi32> to vector<8x256xi32>
    %46 = arith.cmpi eq, %44, %45 : vector<8x256xi32>
    %cst_21 = arith.constant 0.000000e+00 : f32
    %47 = vector.broadcast %cst_21 : f32 to vector<8x256xf32>
    %48 = arith.select %46, %42, %47 : vector<8x256xi1>, vector<8x256xf32>
    %cst_22 = arith.constant dense<0.000000e+00> : vector<256xf32>
    %49 = vector.multi_reduction <add>, %42, %cst_22 [0] : vector<8x256xf32> to vector<256xf32>
    %50 = vector.shape_cast %49 : vector<256xf32> to vector<1x256xf32>
    %cst_23 = arith.constant dense<0.000000e+00> : vector<256xf32>
    %51 = vector.multi_reduction <add>, %48, %cst_23 [0] : vector<8x256xf32> to vector<256xf32>
    %52 = vector.shape_cast %51 : vector<256xf32> to vector<1x256xf32>
    %c0_24 = arith.constant 0 : index
    %c0_25 = arith.constant 0 : index
    %c0_26 = arith.constant 0 : index
    %53 = vector.load %arg4[%c0_24, %c0_25, %c0_26] : memref<1x3x256xf32, #tpu.memory_space<vmem>>, vector<1x1x256xf32>
    %54 = vector.shape_cast %53 : vector<1x1x256xf32> to vector<1x256xf32>
    %55 = arith.addf %54, %50 : vector<1x256xf32>
    %c0_27 = arith.constant 0 : index
    %c0_28 = arith.constant 0 : index
    %c0_29 = arith.constant 0 : index
    %56 = vector.load %arg4[%c0_27, %c0_28, %c0_29] : memref<1x3x256xf32, #tpu.memory_space<vmem>>, vector<1x1x256xf32>
    %57 = vector.shape_cast %56 : vector<1x1x256xf32> to vector<1x256xf32>
    %58 = vector.shape_cast %55 : vector<1x256xf32> to vector<1x1x256xf32>
    tpu.vector_store %arg4[%c0_27, %c0_28, %c0_29], %58 {strides = array<i32>} : memref<1x3x256xf32, #tpu.memory_space<vmem>>, vector<1x1x256xf32>,
    %c0_30 = arith.constant 0 : index
    %c1_31 = arith.constant 1 : index
    %c0_32 = arith.constant 0 : index
    %59 = vector.load %arg4[%c0_30, %c1_31, %c0_32] : memref<1x3x256xf32, #tpu.memory_space<vmem>>, vector<1x1x256xf32>
    %60 = vector.shape_cast %59 : vector<1x1x256xf32> to vector<1x256xf32>
    %61 = arith.addf %60, %12 : vector<1x256xf32>
    %c0_33 = arith.constant 0 : index
    %c1_34 = arith.constant 1 : index
    %c0_35 = arith.constant 0 : index
    %62 = vector.load %arg4[%c0_33, %c1_34, %c0_35] : memref<1x3x256xf32, #tpu.memory_space<vmem>>, vector<1x1x256xf32>
    %63 = vector.shape_cast %62 : vector<1x1x256xf32> to vector<1x256xf32>
    %64 = vector.shape_cast %61 : vector<1x256xf32> to vector<1x1x256xf32>
    tpu.vector_store %arg4[%c0_33, %c1_34, %c0_35], %64 {strides = array<i32>} : memref<1x3x256xf32, #tpu.memory_space<vmem>>, vector<1x1x256xf32>,
    %c0_36 = arith.constant 0 : index
    %c2 = arith.constant 2 : index
    %c0_37 = arith.constant 0 : index
    %65 = vector.load %arg4[%c0_36, %c2, %c0_37] : memref<1x3x256xf32, #tpu.memory_space<vmem>>, vector<1x1x256xf32>
    %66 = vector.shape_cast %65 : vector<1x1x256xf32> to vector<1x256xf32>
    %67 = arith.addf %66, %52 : vector<1x256xf32>
    %c0_38 = arith.constant 0 : index
    %c2_39 = arith.constant 2 : index
    %c0_40 = arith.constant 0 : index
    %68 = vector.load %arg4[%c0_38, %c2_39, %c0_40] : memref<1x3x256xf32, #tpu.memory_space<vmem>>, vector<1x1x256xf32>
    %69 = vector.shape_cast %68 : vector<1x1x256xf32> to vector<1x256xf32>
    %70 = vector.shape_cast %67 : vector<1x256xf32> to vector<1x1x256xf32>
    tpu.vector_store %arg4[%c0_38, %c2_39, %c0_40], %70 {strides = array<i32>} : memref<1x3x256xf32, #tpu.memory_space<vmem>>, vector<1x1x256xf32>,
    return
  }
  func.func @transform_0(%arg0: i32, %arg1: i32) -> (i32, i32) {
    %c1_i32 = arith.constant 1 : i32
    %0 = arith.muli %arg0, %c1_i32 : i32
    %1 = arith.addi %0, %arg1 : i32
    %c0_i32 = arith.constant 0 : i32
    %2 = arith.minsi %1, %c0_i32 : i32
    %c0_i32_0 = arith.constant 0 : i32
    %c0_i32_1 = arith.constant 0 : i32
    return %c0_i32_0, %2 : i32, i32
  }
  func.func @transform_1(%arg0: i32, %arg1: i32) -> (i32, i32) {
    %c1_i32 = arith.constant 1 : i32
    %0 = arith.muli %arg0, %c1_i32 : i32
    %1 = arith.addi %0, %arg1 : i32
    %c0_i32 = arith.constant 0 : i32
    %2 = arith.minsi %1, %c0_i32 : i32
    %c0_i32_0 = arith.constant 0 : i32
    %c0_i32_1 = arith.constant 0 : i32
    return %c0_i32_0, %2 : i32, i32
  }
  func.func @transform_2(%arg0: i32, %arg1: i32) -> (i32, i32, i32) {
    %c0_i32 = arith.constant 0 : i32
    %c0_i32_0 = arith.constant 0 : i32
    %c0_i32_1 = arith.constant 0 : i32
    return %arg0, %c0_i32, %c0_i32_0 : i32, i32, i32
  }
}

</mosaic_0001>

<llo_original>
// kernel: focal_tversky_loss.1
$region0: #{focal_tversky_loss.1}
  #allocation0 [shape = 'u32[]', space=smem, size = 0x4, offset = 0x4, fixed_abs, tag = 'smem constant byte address 0x4 - core index']
  #allocation1 [shape = 'u32[144,128]{1,0:T(1,128)}', space=vmem, size = 0x12000, scoped, tag = 'internal scratch']
  #allocation2 [shape = 's32[8,256]{1,0:T(8,128)}', space=vmem, size = 0x2000, scoped, tag = 'scratch operand']
  %s0 = inlined_call_operand.vmem [shape: f32[8,256], index: 0, kind: input, shape index: {}]
  %s1 = inlined_call_operand.vmem [shape: s32[2,256], index: 1, kind: input, shape index: {}]
  %s2 = inlined_call_operand.vmem [shape: f32[1,3,256], index: 2, kind: output, shape index: {}]
  %s3 = sld [smem:[#allocation0]]
  $region22: #{focal_tversky_loss.1} parent=0
    _
  %s5 = ssub.s32 1, %s3
  %s6 = scalar_select 0, %s5, %s3
  // Predicated region
  $region2: #{focal_tversky_loss.1} parent=0 // pred_check
    _
  $region3: #{focal_tversky_loss.1} parent=0 // pred_check_branch
    %8 = sbr.rel (0) target = $region5
  $region4: #{focal_tversky_loss.1} parent=0 // pred_region
    %s9 = sadd.s32 0, 0
    %p10 = scmp.lt.s32.totalorder %s9, 0
    %s11 = scalar_select %p10, %s9, 0
    %s12 = smul.u32 2, %s11
    %p13 = scmp.lt.s32.totalorder %s12, 1
    %s14 = scalar_select %p13, %s12, 1
    %s15 = smul.addr %s14, 8
    %s16 = scalar_lea.vmem %s0, %s15
    %s17 = sadd.s32 0, 0
    %p18 = scmp.lt.s32.totalorder %s17, 0
    %s19 = scalar_select %p18, %s17, 0
    %s20 = smul.u32 2, %s19
  $region5: #{focal_tversky_loss.1} parent=0 // pred_fallthru
    _
  // Predicated region
  $region6: #{focal_tversky_loss.1} parent=0 // pred_check
    _
  $region7: #{focal_tversky_loss.1} parent=0 // pred_check_branch
    %22 = sbr.rel (0) target = $region9
  $region8: #{focal_tversky_loss.1} parent=0 // pred_region
    %s23 = sadd.s32 0, 0
    %p24 = scmp.lt.s32.totalorder %s23, 0
    %s25 = scalar_select %p24, %s23, 0
    %s26 = smul.u32 2, %s25
    %p27 = scmp.lt.s32.totalorder %s26, 1
    %s28 = scalar_select %p27, %s26, 1
    %s29 = smul.addr %s28, 2
    %s30 = scalar_lea.vmem %s1, %s29
    %s31 = sadd.s32 0, 0
    %p32 = scmp.lt.s32.totalorder %s31, 0
    %s33 = scalar_select %p32, %s31, 0
    %s34 = smul.u32 2, %s33
  $region9: #{focal_tversky_loss.1} parent=0 // pred_fallthru
    _
  %s35 = sadd.s32 0, 0
  %p36 = scmp.lt.s32.totalorder %s35, 0
  %s37 = scalar_select %p36, %s35, 0
  %s38 = smul.u32 2, %s37
  %p39 = scmp.lt.s32.totalorder %s38, 1
  %s40 = scalar_select %p39, %s38, 1
  %s41 = smul.addr %s40, 8
  %s42 = scalar_lea.vmem %s0, %s41
  %s43 = sadd.s32 0, 0
  %p44 = scmp.lt.s32.totalorder %s43, 0
  %s45 = scalar_select %p44, %s43, 0
  %s46 = smul.u32 2, %s45
  %p47 = scmp.lt.s32.totalorder %s46, 1
  %s48 = scalar_select %p47, %s46, 1
  %s49 = smul.addr %s48, 2
  %s50 = scalar_lea.vmem %s1, %s49
  %s51 = sadd.s32 0, 0
  %p52 = scmp.lt.s32.totalorder %s51, 0
  %s53 = scalar_select %p52, %s51, 0
  %s54 = smul.u32 2, %s53
  %p55 = scmp.lt.s32.totalorder %s54, 1
  %s56 = scalar_select %p55, %s54, 1
  %s57 = smul.addr %s56, 8
  %s58 = scalar_lea.vmem %s0, %s57
  %s59 = sadd.s32 0, 0
  %p60 = scmp.lt.s32.totalorder %s59, 0
  %s61 = scalar_select %p60, %s59, 0
  %s62 = smul.u32 2, %s61
  %s63 = sadd.s32 0, 0
  %p64 = scmp.lt.s32.totalorder %s63, 0
  %s65 = scalar_select %p64, %s63, 0
  %s66 = smul.u32 2, %s65
  %p67 = scmp.lt.s32.totalorder %s66, 1
  %s68 = scalar_select %p67, %s66, 1
  %s69 = smul.addr %s68, 2
  %s70 = scalar_lea.vmem %s1, %s69
  %s71 = sadd.s32 0, 0
  %p72 = scmp.lt.s32.totalorder %s71, 0
  %s73 = scalar_select %p72, %s71, 0
  %s74 = smul.u32 2, %s73
  %p75 = scmp.eq.s32.totalorder 0, 0
  // Predicated region
  $region10: #{focal_tversky_loss.1} parent=0 // pred_check
    %p76 = pneg %p75
  $region11: #{focal_tversky_loss.1} parent=0 // pred_check_branch
    %78 = sbr.rel (%p76) target = $region13
  $region12: #{focal_tversky_loss.1} parent=0 // pred_region
    %79 = vst [vmem:[%s2] sm:$0x77] 0.0
  $region13: #{focal_tversky_loss.1} parent=0 // pred_fallthru
    _
  %v80 = vld [vmem:[%s70] sm:$0xf]
  %vm81 = vcmp.ge.s32.totalorder %v80, 0
  %vm82 = vcmp.lt.s32.totalorder %v80, 4
  %vm83 = vmand %vm81, %vm82
  %v84 = vsel %vm83, 1, 0
  %v85 = vcvt.s32.f32 %v84
  %v88 = vunpack.c.l.s4 1983009808
  %v89 = vunpack.c.0.s8 %v88
  %v90 = vlaneseq
  %v91 = vshrl.u32 %v90, 7
  %v92 = vsub.s32 %v89, %v91
  %v93 = vrot.slane %v85, %v92
  %v94 = vcombine.high %v93, %v93
  %vm97 = vcmask 1041408
  %v98 = vsel %vm97, %v93, 0.0
  %v99 = vrot.slane %v98, 4
  %v100 = vadd.f32 %v98, %v99
  %v101 = vrot.slane %v100, 2
  %v102 = vadd.f32 %v100, %v101
  %v103 = vrot.slane %v102, 1
  %v104 = vadd.f32 %v102, %v103
  %v105 = vsel %vm97, %v94, 0.0
  %v106 = vrot.slane %v105, 4
  %v107 = vadd.f32 %v105, %v106
  %v108 = vrot.slane %v107, 2
  %v109 = vadd.f32 %v107, %v108
  %v110 = vrot.slane %v109, 1
  %v111 = vadd.f32 %v109, %v110
  %v112 = vld [vmem:[%s70] ss:$2 sm:$0x3]
  %vm113 = vcmp.ge.s32.totalorder %v112, 0
  %vm114 = vcmp.lt.s32.totalorder %v112, 4
  %vm115 = vmand %vm113, %vm114
  %v116 = vsel %vm115, %v112, 4294967295
  %v117 = vlaneseq
  %v118 = vshrl.u32 %v117, 7
  %v119 = vsub.s32 0, %v118
  %v120 = vrot.slane %v116, %v119
  %v121 = vlaneseq
  %v122 = vshrl.u32 %v121, 7
  %v123 = vsub.s32 1, %v122
  %v124 = vrot.slane %v116, %v123
  %125 = vst [vmem:[#allocation2] sm:$0xf] %v120
  %126 = vst [vmem:[#allocation2 + $0x8] sm:$0xf] %v124
  %s127 = scalar_lea.vmem %s70, 1
  %v128 = vld [vmem:[%s127] ss:$2 sm:$0x3]
  %vm129 = vcmp.ge.s32.totalorder %v128, 0
  %vm130 = vcmp.lt.s32.totalorder %v128, 4
  %vm131 = vmand %vm129, %vm130
  %v132 = vadd.s32 %v128, 4
  %v133 = vsel %vm131, %v132, 4294967295
  %v134 = vlaneseq
  %v135 = vshrl.u32 %v134, 7
  %v136 = vsub.s32 0, %v135
  %v137 = vrot.slane %v133, %v136
  %v138 = vlaneseq
  %v139 = vshrl.u32 %v138, 7
  %v140 = vsub.s32 1, %v139
  %v141 = vrot.slane %v133, %v140
  %142 = vst [vmem:[#allocation2] sm:$0xf0] %v137
  %143 = vst [vmem:[#allocation2 + $0x8] sm:$0xf0] %v141
  %v144 = vld [vmem:[%s58] sm:$0xff]
  %v145 = vld [vmem:[%s58 + $0x8] sm:$0xff]
  %v146 = vmul.f32 %v144, 0.5
  %v147 = vmul.f32 %v145, 0.5
  %v148 = vtanh.pop %v146
  %v149 = vtanh.pop %v147
  %v150 = vlaneseq
  %v151 = vshrl.u32 %v150, 7
  %v152 = vld [vmem:[#allocation2] sm:$0xff]
  %v153 = vld [vmem:[#allocation2 + $0x8] sm:$0xff]
  %vm154 = vcmp.eq.s32.totalorder %v152, %v151
  %vm155 = vcmp.eq.s32.totalorder %v153, %v151
  %v156 = vsel %vm154, %v148, 0.0
  %v157 = vsel %vm155, %v149, 0.0
  %v158 = vrot.slane %v148, 4
  %v159 = vadd.f32 %v148, %v158
  %v160 = vrot.slane %v159, 2
  %v161 = vadd.f32 %v159, %v160
  %v162 = vrot.slane %v161, 1
  %v163 = vadd.f32 %v161, %v162
  %v164 = vrot.slane %v149, 4
  %v165 = vadd.f32 %v149, %v164
  %v166 = vrot.slane %v165, 2
  %v167 = vadd.f32 %v165, %v166
  %v168 = vrot.slane %v167, 1
  %v169 = vadd.f32 %v167, %v168
  %v170 = vrot.slane %v156, 4
  %v171 = vadd.f32 %v156, %v170
  %v172 = vrot.slane %v171, 2
  %v173 = vadd.f32 %v171, %v172
  %v174 = vrot.slane %v173, 1
  %v175 = vadd.f32 %v173, %v174
  %v176 = vrot.slane %v157, 4
  %v177 = vadd.f32 %v157, %v176
  %v178 = vrot.slane %v177, 2
  %v179 = vadd.f32 %v177, %v178
  %v180 = vrot.slane %v179, 1
  %v181 = vadd.f32 %v179, %v180
  %v182 = vld [vmem:[%s2] ss:$4 sm:$0x3]
  %v185 = vcombine.low %v163, %v169
  %v187 = vunpack.c.l.s4 1966171168
  %v188 = vunpack.c.0.s8 %v187
  %v189 = vlaneseq
  %v190 = vshrl.u32 %v189, 7
  %v191 = vsub.s32 %v188, %v190
  %v192 = vrot.slane %v185, %v191
  %v194 = vunpack.c.l.s4 1966171168
  %v195 = vunpack.c.0.s8 %v194
  %v196 = vlaneseq
  %v197 = vshrl.u32 %v196, 7
  %v198 = vsub.s32 %v195, %v197
  %v199 = vrot.slane %v192, %v198
  %v201 = vadd.f32 %v182, %v199
  %v202 = vlaneseq
  %vm203 = vcmp.ge.s32.totalorder %v202, 0
  %vm204 = vcmp.lt.s32.totalorder %v202, 256
  %vm205 = vmand %vm203, %vm204
  %206 = vst.msk [vmem:[%s2] ss:$4 sm:$0x3] %vm205, %v201
  %s207 = scalar_lea.vmem %s2, 1
  %v208 = vld [vmem:[%s207] ss:$4 sm:$0x3]
  %v211 = vcombine.low %v104, %v111
  %v213 = vunpack.c.l.s4 1966171168
  %v214 = vunpack.c.0.s8 %v213
  %v215 = vlaneseq
  %v216 = vshrl.u32 %v215, 7
  %v217 = vsub.s32 %v214, %v216
  %v218 = vrot.slane %v211, %v217
  %v220 = vunpack.c.l.s4 1966171168
  %v221 = vunpack.c.0.s8 %v220
  %v222 = vlaneseq
  %v223 = vshrl.u32 %v222, 7
  %v224 = vsub.s32 %v221, %v223
  %v225 = vrot.slane %v218, %v224
  %v227 = vadd.f32 %v208, %v225
  %228 = vst.msk [vmem:[%s207] ss:$4 sm:$0x3] %vm205, %v227
  %s229 = scalar_lea.vmem %s2, 2
  %v230 = vld [vmem:[%s229] ss:$4 sm:$0x3]
  %v233 = vcombine.low %v175, %v181
  %v235 = vunpack.c.l.s4 1966171168
  %v236 = vunpack.c.0.s8 %v235
  %v237 = vlaneseq
  %v238 = vshrl.u32 %v237, 7
  %v239 = vsub.s32 %v236, %v238
  %v240 = vrot.slane %v233, %v239
  %v242 = vunpack.c.l.s4 1966171168
  %v243 = vunpack.c.0.s8 %v242
  %v244 = vlaneseq
  %v245 = vshrl.u32 %v244, 7
  %v246 = vsub.s32 %v243, %v245
  %v247 = vrot.slane %v240, %v246
  %v249 = vadd.f32 %v230, %v247
  %250 = vst.msk [vmem:[%s229] ss:$4 sm:$0x3] %vm205, %v249
  // Predicated region
  $region14: #{focal_tversky_loss.1} parent=0 // pred_check
    _
  $region15: #{focal_tversky_loss.1} parent=0 // pred_check_branch
    %252 = sbr.rel (0) target = $region17
  $region16: #{focal_tversky_loss.1} parent=0 // pred_region
    _
  $region17: #{focal_tversky_loss.1} parent=0 // pred_fallthru
    _
  // Predicated region
  $region18: #{focal_tversky_loss.1} parent=0 // pred_check
    _
  $region19: #{focal_tversky_loss.1} parent=0 // pred_check_branch
    %254 = sbr.rel (0) target = $region21
  $region20: #{focal_tversky_loss.1} parent=0 // pred_region
    _
  $region21: #{focal_tversky_loss.1} parent=0 // pred_fallthru
    _

</llo_original>
